<compile_context>
chip_gen: v5e
topology: v5e:2x2
jax: 0.10.0
libtpu: 0.0.40
codegen_flags: <defaults>
</compile_context>

<pallas_src>
import functools
import math

import jax
import jax.numpy as jnp
from jax import lax
from jax.experimental import pallas as pl
from jax.experimental.pallas import tpu as pltpu


# ----------------------------- fused Pallas kernel ---------------------------


def _fused_forward_kernel(*refs, n_layers, pool, dh, dz, out_width, out_pad):
    """Whole NetGaussScaleMean forward for one [tile, ...] slab of rows.

    Inputs:
      xin  [tile, din0+1]  : [x_flat | xz_flat | t]; rows already duplicated for
                             the two t halves (the MLP output is t-independent).
      (w_k, b_k)*n_layers  : block-diagonal fused h/z weights; hidden layers are
                             pre-rearranged so maxout pool groups are contiguous
                             column blocks; w_0 has an extra zero row for the t
                             column.
      wr   [2*nb, 2*D]     : [wr1 | wr2] merged along output columns.
      br   [1, 2*D]        : [b1 | b2].
      fc   [2, 2*nb]       : Fourier phase (row0 = 2*pi*freq/num_data, row1 =
                             0 | pi/2 shift so sin covers both sin and cos).
      lc   [3, D]          : lane coefficient rows a/c, b/d, e/f, each already
                             divided by dh (h lanes) or dz (z lanes).
      scal SMEM (2,)       : g/D, m.
    Output:
      slab [tile, out_pad] : [logits(1) | h|hz (D) | tm1 (D) | tm2 (D) | 0-pad].
    """
    n_in = 1 + 2 * n_layers + 5
    in_refs = refs[:n_in]
    out_ref = refs[n_in]

    xin_ref = in_refs[0]
    layer_refs = in_refs[1:1 + 2 * n_layers]
    wr_ref, br_ref, fc_ref, lc_ref, scal_ref = in_refs[1 + 2 * n_layers:]

    D = dh + dz
    din0 = xin_ref.shape[1] - 1            # last input column is t

    # ---- fused h/z MLP: one block-diagonal matmul (+ one maxout) per layer ----
    hhz = xin_ref[...]
    for k in range(n_layers):
        w = layer_refs[2 * k][...]
        bia = layer_refs[2 * k + 1][...]
        y = jnp.dot(hhz, w, preferred_element_type=jnp.float32) + bia
        if k != n_layers - 1:
            n = y.shape[1] // pool
            mx = y[:, 0:n]
            for p in range(1, pool):
                mx = jnp.maximum(mx, y[:, p * n:(p + 1) * n])
            hhz = mx
        else:
            hhz = y                                         # [tile, D] = [h | hz]

    # ---- Fourier basis [sin | cos] in one EUP pass (cos(x) = sin(x + pi/2)) ----
    t_col = xin_ref[:, din0:din0 + 1]                       # [tile, 1]
    phase = fc_ref[0:1, :] * t_col + fc_ref[1:2, :]         # [tile, 2*nb]
    tb = jnp.sin(phase)

    # ---- single merged modulation matmul: tb @ [wr1 | wr2] ----
    tm = jnp.dot(tb, wr_ref[...], preferred_element_type=jnp.float32) + br_ref[...]
    tml1 = tm[:, 0:D]
    tm2v = tm[:, D:2 * D]
    tm1v = jnp.exp(tml1)

    # ---- scale/mean modulation + single folded row reduction ----
    acv = lc_ref[0:1, :]        # a (h lanes) / c (z lanes), pre-divided by dh/dz
    bdv = lc_ref[1:2, :]        # b / d, pre-divided
    efv = lc_ref[2:3, :]        # e / f, pre-divided
    gD = scal_ref[0]            # g / D
    m = scal_ref[1]

    hsq = hhz * hhz
    # logits = -Q + Qbar + Z + m, folded into one lane reduction:
    red = hsq * (efv - tm1v * acv) - hhz * tm1v * tm2v * bdv + tml1 * gD
    logits = jnp.sum(red, axis=1, keepdims=True) + m        # [tile, 1]

    # ---- single lane-dense output slab (one contiguous writeback DMA) ----
    out_ref[:, 0:1] = logits
    out_ref[:, 1:1 + D] = hhz
    out_ref[:, 1 + D:1 + 2 * D] = tm1v
    out_ref[:, 1 + 2 * D:1 + 3 * D] = tm2v
    if out_pad > out_width:
        out_ref[:, out_width:out_pad] = jnp.zeros(
            (hhz.shape[0], out_pad - out_width), jnp.float32)


# ------------------------------ JAX wrapper -----------------------------------


def fused_forward(xin2t, fused_layers, wr_cat, br_cat, fourier_coef, lane_coef,
                  scal2, *, pool, dh, dz, tile, out_pad):
    B2p, din1 = xin2t.shape
    D = dh + dz
    n_layers = len(fused_layers)
    grid = (B2p // tile,)

    in_specs = [pl.BlockSpec((tile, din1), lambda i: (i, 0))]
    args = [xin2t]
    for w, b in fused_layers:
        in_specs.append(pl.BlockSpec(w.shape, lambda i: (0, 0)))
        in_specs.append(pl.BlockSpec(b.shape, lambda i: (0, 0)))
        args += [w, b]
    for arr in (wr_cat, br_cat, fourier_coef, lane_coef):
        in_specs.append(pl.BlockSpec(arr.shape, lambda i: (0, 0)))
        args.append(arr)
    in_specs.append(pl.BlockSpec(memory_space=pltpu.MemorySpace.SMEM))
    args.append(scal2)

    out_shape = jax.ShapeDtypeStruct((B2p, out_pad), jnp.float32)
    out_specs = pl.BlockSpec((tile, out_pad), lambda i: (i, 0))

    kernel = functools.partial(_fused_forward_kernel, n_layers=n_layers,
                               pool=pool, dh=dh, dz=dz,
                               out_width=1 + 3 * D, out_pad=out_pad)
    return pl.pallas_call(
        kernel,
        grid=grid,
        out_shape=out_shape,
        in_specs=in_specs,
        out_specs=out_specs,
        compiler_params=pltpu.CompilerParams(
            dimension_semantics=("parallel",),
            vmem_limit_bytes=32 * 1024 * 1024),
    )(*args)


# --------------------------------- model --------------------------------------


class NetGaussScaleMeanPallas:
    MAX_TILE_ROWS = 1024     # row tile for large batches (multiple of 8)
    SPLIT_THRESHOLD = 64     # below this, one full-extent block (no pad/split)

    def __init__(self, h_sizes, num_dim, num_data, num_basis, ar_order=1,
                 h_sizes_z=None, pool_size=2, key=None):
        if h_sizes_z is None:
            h_sizes_z = list(h_sizes)
        # TODO(synk): the fused block-diagonal path assumes both MLP stacks have
        # the same depth (the torch default h_sizes_z = h_sizes); differing
        # depths would require two separate per-branch stacks in the kernel.
        assert len(h_sizes) == len(h_sizes_z)
        self.num_dim = num_dim
        self.num_data = num_data
        self.num_basis = num_basis
        self.ar_order = ar_order
        self.pool_size = pool_size
        self.dh = h_sizes[-1]
        self.dz = h_sizes_z[-1]
        key = key if key is not None else jax.random.PRNGKey(0)

        h_aug = [num_dim * (ar_order + 1)] + list(h_sizes)
        hz_aug = [num_dim * ar_order] + list(h_sizes_z)
        n_keys = (len(h_aug) - 1) + (len(hz_aug) - 1) + 2
        keys = list(jax.random.split(key, n_keys))

        def make_linear(k, din, dout):
            kw, kb = jax.random.split(k)
            bw = math.sqrt(6.0 / (din + dout))          # xavier_uniform_
            w = jax.random.uniform(kw, (din, dout), jnp.float32, -bw, bw)
            bb = 1.0 / math.sqrt(din)                   # torch Linear default bias
            b = jax.random.uniform(kb, (dout,), jnp.float32, -bb, bb)
            return w, b

        ki = 0
        self.layer = []
        for k in range(1, len(h_aug) - 1):
            self.layer.append(make_linear(keys[ki], h_aug[k - 1],
                                          h_aug[k] * pool_size)); ki += 1
        self.layer.append(make_linear(keys[ki], h_aug[-2], h_aug[-1])); ki += 1

        self.layerz = []
        for k in range(1, len(hz_aug) - 1):
            self.layerz.append(make_linear(keys[ki], hz_aug[k - 1],
                                           hz_aug[k] * pool_size)); ki += 1
        self.layerz.append(make_linear(keys[ki], hz_aug[-2], hz_aug[-1])); ki += 1

        dsum = self.dh + self.dz
        self.wr1_w, self.wr1_b = make_linear(keys[ki], 2 * num_basis, dsum); ki += 1
        self.wr2_w, self.wr2_b = make_linear(keys[ki], 2 * num_basis, dsum); ki += 1

        # a..g initialized to 1, m to 0 (torch constant_ init)
        self.scalars = jnp.array([1., 1., 1., 1., 1., 1., 1., 0.], jnp.float32)

        # ---- fused parameters, precomputed once (hoisted out of forward) -----
        self.fused_layers = []
        for k in range(len(self.layer) - 1):
            self.fused_layers.append(self._combine_maxout(
                *self.layer[k], *self.layerz[k], pool_size))
        self.fused_layers.append(self._combine_linear(
            *self.layer[-1], *self.layerz[-1]))
        # Extra zero input row on the first layer for the packed t column.
        w0, b0 = self.fused_layers[0]
        self.fused_layers[0] = (
            jnp.concatenate([w0, jnp.zeros((1, w0.shape[1]), jnp.float32)], 0), b0)

        self.wr_cat = jnp.concatenate([self.wr1_w, self.wr2_w], axis=1)
        self.br_cat = jnp.concatenate([self.wr1_b, self.wr2_b]).reshape(1, -1)

        # Grid-invariant Fourier phase rows: phase = scale*t + shift, sin(phase)
        # yields [sin | cos] (cos(x) = sin(x + pi/2)).
        freq = jnp.arange(1, num_basis + 1, dtype=jnp.float32)
        scale = (2.0 * math.pi / float(num_data)) * jnp.concatenate([freq, freq])
        shift = jnp.concatenate([jnp.zeros((num_basis,), jnp.float32),
                                 jnp.full((num_basis,), 0.5 * math.pi, jnp.float32)])
        self.fourier_coef = jnp.stack([scale, shift], axis=0)    # [2, 2*nb]

    @staticmethod
    def _combine_maxout(wh, bh, wz, bz, pool):
        """Block-diag h/z hidden-layer weight; maxout pool groups become
        contiguous column blocks:  column index = p*(nh+nz) + c."""
        din_h, nhp = wh.shape
        din_z, nzp = wz.shape
        nh, nz = nhp // pool, nzp // pool
        wh_g = wh.reshape(din_h, nh, pool).transpose(0, 2, 1)   # [din_h, pool, nh]
        wz_g = wz.reshape(din_z, nz, pool).transpose(0, 2, 1)   # [din_z, pool, nz]
        wc = jnp.zeros((din_h + din_z, pool, nh + nz), jnp.float32)
        wc = wc.at[:din_h, :, :nh].set(wh_g)
        wc = wc.at[din_h:, :, nh:].set(wz_g)
        wc = wc.reshape(din_h + din_z, pool * (nh + nz))
        bc = jnp.concatenate([bh.reshape(nh, pool).T,
                              bz.reshape(nz, pool).T], axis=1)
        bc = bc.reshape(1, pool * (nh + nz))
        return wc, bc

    @staticmethod
    def _combine_linear(wh, bh, wz, bz):
        din_h, nh = wh.shape
        din_z, nz = wz.shape
        wc = jnp.zeros((din_h + din_z, nh + nz), jnp.float32)
        wc = wc.at[:din_h, :nh].set(wh)
        wc = wc.at[din_h:, nh:].set(wz)
        bc = jnp.concatenate([bh, bz]).reshape(1, nh + nz)
        return wc, bc

    def forward(self, x, t, perm):
        B = x.shape[0]
        D = self.dh + self.dz
        # torch.randperm replaced by an explicit deterministic permutation (glue)
        t2 = jnp.concatenate([t, t[perm]], axis=0).astype(jnp.float32).reshape(-1, 1)

        x_flat = x.reshape(B, -1).astype(jnp.float32)
        xz_flat = x[:, 1:, :].reshape(B, -1).astype(jnp.float32)
        xin = jnp.concatenate([x_flat, xz_flat], axis=1)
        # MLP output is identical for both t halves -> duplicate the tiny input
        # rows once; t packed as the last column so there is one input slab.
        xin2 = jnp.concatenate([xin, xin], axis=0)
        xin2t = jnp.concatenate([xin2, t2], axis=1)

        B2 = 2 * B
        if B2 <= self.SPLIT_THRESHOLD:
            tile, B2p = B2, B2                    # single full-extent block
        else:
            # >=2 grid steps so v7x's two TensorCores both run; cap the tile.
            half = ((B2 + 1) // 2 + 7) // 8 * 8
            tile = min(self.MAX_TILE_ROWS, half)
            B2p = ((B2 + tile - 1) // tile) * tile
            if B2p != B2:
                xin2t = jnp.pad(xin2t, ((0, B2p - B2), (0, 0)))

        # Grid-invariant lane coefficient rows (built once per call, not per step)
        a_, b_, c_, d_, e_, f_, g_, m_ = [self.scalars[i] for i in range(8)]
        is_h = jnp.arange(D) < self.dh
        inv_n = jnp.where(is_h, 1.0 / self.dh, 1.0 / self.dz)
        lane_coef = jnp.stack([jnp.where(is_h, a_, c_) * inv_n,
                               jnp.where(is_h, b_, d_) * inv_n,
                               jnp.where(is_h, e_, f_) * inv_n],
                              axis=0).astype(jnp.float32)          # [3, D]
        scal2 = jnp.stack([g_ / D, m_]).astype(jnp.float32)        # [g/D, m]

        out_pad = ((1 + 3 * D + 127) // 128) * 128
        slab = fused_forward(
            xin2t, self.fused_layers, self.wr_cat, self.br_cat,
            self.fourier_coef, lane_coef, scal2,
            pool=self.pool_size, dh=self.dh, dz=self.dz,
            tile=tile, out_pad=out_pad)

        slab = slab[:B2]
        logits = slab[:, 0]
        h = slab[:, 1:1 + self.dh]
        hz = slab[:, 1 + self.dh:1 + D]
        tm1 = slab[:, 1 + D:1 + 2 * D]
        tm2 = slab[:, 1 + 2 * D:1 + 3 * D]
        return logits, h, hz, tm1, tm2


# --------------------------- pure-JAX reference --------------------------------


def reference_forward(model, x, t, perm):
    hp = lax.Precision.HIGHEST
    B = x.shape[0]
    pool = model.pool_size
    t2 = jnp.concatenate([t, t[perm]], axis=0).astype(jnp.float32)

    def maxout(v):
        return jnp.max(v.reshape(v.shape[0], v.shape[1] // pool, pool), axis=2)

    h = x.reshape(B, -1).astype(jnp.float32)
    for k, (w, b) in enumerate(model.layer):
        h = jnp.dot(h, w, precision=hp) + b
        if k != len(model.layer) - 1:
            h = maxout(h)
    h = jnp.concatenate([h, h], axis=0)

    hz = x[:, 1:, :].reshape(B, -1).astype(jnp.float32)
    for k, (w, b) in enumerate(model.layerz):
        hz = jnp.dot(hz, w, precision=hp) + b
        if k != len(model.layerz) - 1:
            hz = maxout(hz)
    hz = jnp.concatenate([hz, hz], axis=0)

    fn = (2.0 * jnp.pi
          * jnp.arange(1, model.num_basis + 1, dtype=jnp.float32).reshape(1, -1)
          * t2.reshape(-1, 1) / model.num_data)
    tb = jnp.concatenate([jnp.sin(fn), jnp.cos(fn)], axis=1)
    tml1 = jnp.dot(tb, model.wr1_w, precision=hp) + model.wr1_b
    tm1 = jnp.exp(tml1)
    tm2 = jnp.dot(tb, model.wr2_w, precision=hp) + model.wr2_b

    dh = h.shape[1]
    a_, b_, c_, d_, e_, f_, g_, m_ = [model.scalars[i] for i in range(8)]
    hsq, hzsq = h ** 2, hz ** 2
    h_mod = hsq * tm1[:, :dh] * a_ + h * tm1[:, :dh] * tm2[:, :dh] * b_
    hz_mod = hzsq * tm1[:, dh:] * c_ + hz * tm1[:, dh:] * tm2[:, dh:] * d_
    Q = jnp.mean(h_mod, axis=1) + jnp.mean(hz_mod, axis=1)
    Qbar = jnp.mean(hsq * e_, axis=1) + jnp.mean(hzsq * f_, axis=1)
    Z = jnp.mean(tml1 * g_, axis=1)
    logits = -Q + Qbar + Z + m_
    return logits, h, hz, tm1, tm2


# ---------------------------------- main ---------------------------------------


def _check(model, x, t, perm):
    outs = model.forward(x, t, perm)
    outs = jax.block_until_ready(outs)
    refs = reference_forward(model, x, t, perm)
    for got, ref in zip(outs, refs):
        assert got.shape == ref.shape, (got.shape, ref.shape)
        assert jnp.allclose(got, ref, rtol=1e-3, atol=1e-3)


if __name__ == "__main__":
    h_sizes = [16, 8]
    num_dim, num_data, num_basis, ar_order, pool = 4, 64, 4, 1, 2

    model = NetGaussScaleMeanPallas(h_sizes, num_dim, num_data, num_basis,
                                    ar_order=ar_order, pool_size=pool,
                                    key=jax.random.PRNGKey(42))

    key = jax.random.PRNGKey(0)

    # Small batch: single full-extent block (grid = 1).
    kx, kt, kp, key = jax.random.split(key, 4)
    batch = 2
    x = jax.random.normal(kx, (batch, ar_order + 1, num_dim), dtype=jnp.float32)
    t = jax.random.randint(kt, (batch,), 0, num_data, dtype=jnp.int32)
    perm = jax.random.permutation(kp, batch)
    _check(model, x, t, perm)

    # Larger batch: exercises the multi-step ("parallel") grid + row padding.
    kx, kt, kp, key = jax.random.split(key, 4)
    batch = 37
    x = jax.random.normal(kx, (batch, ar_order + 1, num_dim), dtype=jnp.float32)
    t = jax.random.randint(kt, (batch,), 0, num_data, dtype=jnp.int32)
    perm = jax.random.permutation(kp, batch)
    _check(model, x, t, perm)

    print("KERNEL_OK")
</pallas_src>

<mosaic_0001>
module attributes {stable_mosaic.version = 11 : i64} {
  func.func @_fused_forward_kernel(%arg0: i32, %arg1: memref<4x13xf32, #tpu.memory_space<vmem>>, %arg2: memref<13x64xf32, #tpu.memory_space<vmem>>, %arg3: memref<1x64xf32, #tpu.memory_space<vmem>>, %arg4: memref<32x16xf32, #tpu.memory_space<vmem>>, %arg5: memref<1x16xf32, #tpu.memory_space<vmem>>, %arg6: memref<8x32xf32, #tpu.memory_space<vmem>>, %arg7: memref<1x32xf32, #tpu.memory_space<vmem>>, %arg8: memref<2x8xf32, #tpu.memory_space<vmem>>, %arg9: memref<3x16xf32, #tpu.memory_space<vmem>>, %arg10: memref<2xf32, #tpu.memory_space<smem>>, %arg11: memref<4x128xf32, #tpu.memory_space<vmem>>) attributes {dimension_semantics = [#tpu.dimension_semantics<parallel>], iteration_bounds = array<i64: 1>, scalar_prefetch = 0 : i64, scratch_operands = 0 : i64, tpu.core_type = #tpu.core_type<tc>, window_params = [{transform_indices = @transform_0, window_bounds = array<i64: 4, 13>}, {pipeline_mode = #tpu.pipeline_mode<synchronous>, transform_indices = @transform_1, window_bounds = array<i64: 13, 64>}, {pipeline_mode = #tpu.pipeline_mode<synchronous>, transform_indices = @transform_2, window_bounds = array<i64: 1, 64>}, {pipeline_mode = #tpu.pipeline_mode<synchronous>, transform_indices = @transform_3, window_bounds = array<i64: 32, 16>}, {pipeline_mode = #tpu.pipeline_mode<synchronous>, transform_indices = @transform_4, window_bounds = array<i64: 1, 16>}, {pipeline_mode = #tpu.pipeline_mode<synchronous>, transform_indices = @transform_5, window_bounds = array<i64: 8, 32>}, {pipeline_mode = #tpu.pipeline_mode<synchronous>, transform_indices = @transform_6, window_bounds = array<i64: 1, 32>}, {pipeline_mode = #tpu.pipeline_mode<synchronous>, transform_indices = @transform_7, window_bounds = array<i64: 2, 8>}, {pipeline_mode = #tpu.pipeline_mode<synchronous>, transform_indices = @transform_8, window_bounds = array<i64: 3, 16>}, {transform_indices = @transform_9, window_bounds = array<i64: 2>}, {transform_indices = @transform_10, window_bounds = array<i64: 4, 128>}]} {
    %c0 = arith.constant 0 : index
    %c0_0 = arith.constant 0 : index
    %0 = vector.load %arg1[%c0, %c0_0] : memref<4x13xf32, #tpu.memory_space<vmem>>, vector<4x13xf32>
    %c0_1 = arith.constant 0 : index
    %c0_2 = arith.constant 0 : index
    %1 = vector.load %arg2[%c0_1, %c0_2] : memref<13x64xf32, #tpu.memory_space<vmem>>, vector<13x64xf32>
    %c0_3 = arith.constant 0 : index
    %c0_4 = arith.constant 0 : index
    %2 = vector.load %arg3[%c0_3, %c0_4] : memref<1x64xf32, #tpu.memory_space<vmem>>, vector<1x64xf32>
    %cst = arith.constant dense<0.000000e+00> : vector<4x64xf32>
    %3 = tpu.matmul %0, %1, %cst {dimension_numbers = #tpu.dot_dimension_numbers<[1], [0], [0], [1], [0, 0, 1, 1], [], []>} : vector<4x13xf32>, vector<13x64xf32>, vector<4x64xf32> -> vector<4x64xf32>
    %4 = vector.broadcast %2 : vector<1x64xf32> to vector<4x64xf32>
    %5 = arith.addf %3, %4 : vector<4x64xf32>
    %6 = vector.extract_strided_slice %5 {offsets = [0, 0], sizes = [4, 32], strides = [1, 1]} : vector<4x64xf32> to vector<4x32xf32>
    %7 = vector.extract_strided_slice %5 {offsets = [0, 32], sizes = [4, 32], strides = [1, 1]} : vector<4x64xf32> to vector<4x32xf32>
    %8 = arith.maximumf %6, %7 : vector<4x32xf32>
    %c0_5 = arith.constant 0 : index
    %c0_6 = arith.constant 0 : index
    %9 = vector.load %arg4[%c0_5, %c0_6] : memref<32x16xf32, #tpu.memory_space<vmem>>, vector<32x16xf32>
    %c0_7 = arith.constant 0 : index
    %c0_8 = arith.constant 0 : index
    %10 = vector.load %arg5[%c0_7, %c0_8] : memref<1x16xf32, #tpu.memory_space<vmem>>, vector<1x16xf32>
    %cst_9 = arith.constant dense<0.000000e+00> : vector<4x16xf32>
    %11 = tpu.matmul %8, %9, %cst_9 {dimension_numbers = #tpu.dot_dimension_numbers<[1], [0], [0], [1], [0, 0, 1, 1], [], []>} : vector<4x32xf32>, vector<32x16xf32>, vector<4x16xf32> -> vector<4x16xf32>
    %12 = vector.broadcast %10 : vector<1x16xf32> to vector<4x16xf32>
    %13 = arith.addf %11, %12 : vector<4x16xf32>
    %c0_10 = arith.constant 0 : index
    %c12 = arith.constant 12 : index
    %14 = vector.load %arg1[%c0_10, %c12] : memref<4x13xf32, #tpu.memory_space<vmem>>, vector<4x1xf32>
    %c0_11 = arith.constant 0 : index
    %c0_12 = arith.constant 0 : index
    %15 = vector.load %arg8[%c0_11, %c0_12] : memref<2x8xf32, #tpu.memory_space<vmem>>, vector<1x8xf32>
    %16 = vector.broadcast %15 : vector<1x8xf32> to vector<4x8xf32>
    %17 = vector.broadcast %14 : vector<4x1xf32> to vector<4x8xf32>
    %18 = arith.mulf %16, %17 : vector<4x8xf32>
    %c1 = arith.constant 1 : index
    %c0_13 = arith.constant 0 : index
    %19 = vector.load %arg8[%c1, %c0_13] : memref<2x8xf32, #tpu.memory_space<vmem>>, vector<1x8xf32>
    %20 = vector.broadcast %19 : vector<1x8xf32> to vector<4x8xf32>
    %21 = arith.addf %18, %20 : vector<4x8xf32>
    %22 = math.sin %21 : vector<4x8xf32>
    %c0_14 = arith.constant 0 : index
    %c0_15 = arith.constant 0 : index
    %23 = vector.load %arg6[%c0_14, %c0_15] : memref<8x32xf32, #tpu.memory_space<vmem>>, vector<8x32xf32>
    %cst_16 = arith.constant dense<0.000000e+00> : vector<4x32xf32>
    %24 = tpu.matmul %22, %23, %cst_16 {dimension_numbers = #tpu.dot_dimension_numbers<[1], [0], [0], [1], [0, 0, 1, 1], [], []>} : vector<4x8xf32>, vector<8x32xf32>, vector<4x32xf32> -> vector<4x32xf32>
    %c0_17 = arith.constant 0 : index
    %c0_18 = arith.constant 0 : index
    %25 = vector.load %arg7[%c0_17, %c0_18] : memref<1x32xf32, #tpu.memory_space<vmem>>, vector<1x32xf32>
    %26 = vector.broadcast %25 : vector<1x32xf32> to vector<4x32xf32>
    %27 = arith.addf %24, %26 : vector<4x32xf32>
    %28 = vector.extract_strided_slice %27 {offsets = [0, 0], sizes = [4, 16], strides = [1, 1]} : vector<4x32xf32> to vector<4x16xf32>
    %29 = vector.extract_strided_slice %27 {offsets = [0, 16], sizes = [4, 16], strides = [1, 1]} : vector<4x32xf32> to vector<4x16xf32>
    %30 = math.exp %28 : vector<4x16xf32>
    %c0_19 = arith.constant 0 : index
    %c0_20 = arith.constant 0 : index
    %31 = vector.load %arg9[%c0_19, %c0_20] : memref<3x16xf32, #tpu.memory_space<vmem>>, vector<1x16xf32>
    %c1_21 = arith.constant 1 : index
    %c0_22 = arith.constant 0 : index
    %32 = vector.load %arg9[%c1_21, %c0_22] : memref<3x16xf32, #tpu.memory_space<vmem>>, vector<1x16xf32>
    %c2 = arith.constant 2 : index
    %c0_23 = arith.constant 0 : index
    %33 = vector.load %arg9[%c2, %c0_23] : memref<3x16xf32, #tpu.memory_space<vmem>>, vector<1x16xf32>
    %c0_24 = arith.constant 0 : index
    %34 = memref.load %arg10[%c0_24] : memref<2xf32, #tpu.memory_space<smem>>
    %c1_25 = arith.constant 1 : index
    %35 = memref.load %arg10[%c1_25] : memref<2xf32, #tpu.memory_space<smem>>
    %36 = arith.mulf %13, %13 : vector<4x16xf32>
    %37 = vector.broadcast %31 : vector<1x16xf32> to vector<4x16xf32>
    %38 = arith.mulf %30, %37 : vector<4x16xf32>
    %39 = vector.broadcast %33 : vector<1x16xf32> to vector<4x16xf32>
    %40 = arith.subf %39, %38 : vector<4x16xf32>
    %41 = arith.mulf %36, %40 : vector<4x16xf32>
    %42 = arith.mulf %13, %30 : vector<4x16xf32>
    %43 = arith.mulf %42, %29 : vector<4x16xf32>
    %44 = vector.broadcast %32 : vector<1x16xf32> to vector<4x16xf32>
    %45 = arith.mulf %43, %44 : vector<4x16xf32>
    %46 = arith.subf %41, %45 : vector<4x16xf32>
    %47 = vector.broadcast %34 : f32 to vector<4x16xf32>
    %48 = arith.mulf %28, %47 : vector<4x16xf32>
    %49 = arith.addf %46, %48 : vector<4x16xf32>
    %cst_26 = arith.constant dense<0.000000e+00> : vector<4xf32>
    %50 = vector.multi_reduction <add>, %49, %cst_26 [1] : vector<4x16xf32> to vector<4xf32>
    %51 = vector.shape_cast %50 : vector<4xf32> to vector<4x1xf32>
    %52 = vector.broadcast %35 : f32 to vector<4x1xf32>
    %53 = arith.addf %51, %52 : vector<4x1xf32>
    %c0_27 = arith.constant 0 : index
    %c0_28 = arith.constant 0 : index
    %54 = vector.load %arg11[%c0_27, %c0_28] : memref<4x128xf32, #tpu.memory_space<vmem>>, vector<4x1xf32>
    tpu.vector_store %arg11[%c0_27, %c0_28], %53 {strides = array<i32>} : memref<4x128xf32, #tpu.memory_space<vmem>>, vector<4x1xf32>,
    %c0_29 = arith.constant 0 : index
    %c1_30 = arith.constant 1 : index
    %55 = vector.load %arg11[%c0_29, %c1_30] : memref<4x128xf32, #tpu.memory_space<vmem>>, vector<4x16xf32>
    tpu.vector_store %arg11[%c0_29, %c1_30], %13 {strides = array<i32>} : memref<4x128xf32, #tpu.memory_space<vmem>>, vector<4x16xf32>,
    %c0_31 = arith.constant 0 : index
    %c17 = arith.constant 17 : index
    %56 = vector.load %arg11[%c0_31, %c17] : memref<4x128xf32, #tpu.memory_space<vmem>>, vector<4x16xf32>
    tpu.vector_store %arg11[%c0_31, %c17], %30 {strides = array<i32>} : memref<4x128xf32, #tpu.memory_space<vmem>>, vector<4x16xf32>,
    %c0_32 = arith.constant 0 : index
    %c33 = arith.constant 33 : index
    %57 = vector.load %arg11[%c0_32, %c33] : memref<4x128xf32, #tpu.memory_space<vmem>>, vector<4x16xf32>
    tpu.vector_store %arg11[%c0_32, %c33], %29 {strides = array<i32>} : memref<4x128xf32, #tpu.memory_space<vmem>>, vector<4x16xf32>,
    %cst_33 = arith.constant 0.000000e+00 : f32
    %58 = vector.broadcast %cst_33 : f32 to vector<4x79xf32>
    %c0_34 = arith.constant 0 : index
    %c49 = arith.constant 49 : index
    %59 = vector.load %arg11[%c0_34, %c49] : memref<4x128xf32, #tpu.memory_space<vmem>>, vector<4x79xf32>
    tpu.vector_store %arg11[%c0_34, %c49], %58 {strides = array<i32>} : memref<4x128xf32, #tpu.memory_space<vmem>>, vector<4x79xf32>,
    return
  }
  func.func @transform_0(%arg0: i32) -> (i32, i32) {
    %c0_i32 = arith.constant 0 : i32
    %c0_i32_0 = arith.constant 0 : i32
    return %arg0, %c0_i32 : i32, i32
  }
  func.func @transform_1(%arg0: i32) -> (i32, i32) {
    %c0_i32 = arith.constant 0 : i32
    %c0_i32_0 = arith.constant 0 : i32
    %c0_i32_1 = arith.constant 0 : i32
    return %c0_i32, %c0_i32_0 : i32, i32
  }
  func.func @transform_2(%arg0: i32) -> (i32, i32) {
    %c0_i32 = arith.constant 0 : i32
    %c0_i32_0 = arith.constant 0 : i32
    %c0_i32_1 = arith.constant 0 : i32
    return %c0_i32, %c0_i32_0 : i32, i32
  }
  func.func @transform_3(%arg0: i32) -> (i32, i32) {
    %c0_i32 = arith.constant 0 : i32
    %c0_i32_0 = arith.constant 0 : i32
    %c0_i32_1 = arith.constant 0 : i32
    return %c0_i32, %c0_i32_0 : i32, i32
  }
  func.func @transform_4(%arg0: i32) -> (i32, i32) {
    %c0_i32 = arith.constant 0 : i32
    %c0_i32_0 = arith.constant 0 : i32
    %c0_i32_1 = arith.constant 0 : i32
    return %c0_i32, %c0_i32_0 : i32, i32
  }
  func.func @transform_5(%arg0: i32) -> (i32, i32) {
    %c0_i32 = arith.constant 0 : i32
    %c0_i32_0 = arith.constant 0 : i32
    %c0_i32_1 = arith.constant 0 : i32
    return %c0_i32, %c0_i32_0 : i32, i32
  }
  func.func @transform_6(%arg0: i32) -> (i32, i32) {
    %c0_i32 = arith.constant 0 : i32
    %c0_i32_0 = arith.constant 0 : i32
    %c0_i32_1 = arith.constant 0 : i32
    return %c0_i32, %c0_i32_0 : i32, i32
  }
  func.func @transform_7(%arg0: i32) -> (i32, i32) {
    %c0_i32 = arith.constant 0 : i32
    %c0_i32_0 = arith.constant 0 : i32
    %c0_i32_1 = arith.constant 0 : i32
    return %c0_i32, %c0_i32_0 : i32, i32
  }
  func.func @transform_8(%arg0: i32) -> (i32, i32) {
    %c0_i32 = arith.constant 0 : i32
    %c0_i32_0 = arith.constant 0 : i32
    %c0_i32_1 = arith.constant 0 : i32
    return %c0_i32, %c0_i32_0 : i32, i32
  }
  func.func @transform_9(%arg0: i32) -> i32 {
    %c0_i32 = arith.constant 0 : i32
    %c0_i32_0 = arith.constant 0 : i32
    return %c0_i32 : i32
  }
  func.func @transform_10(%arg0: i32) -> (i32, i32) {
    %c0_i32 = arith.constant 0 : i32
    %c0_i32_0 = arith.constant 0 : i32
    return %arg0, %c0_i32 : i32, i32
  }
}

</mosaic_0001>

<llo_original>
// kernel: tpu_custom_call.1
$region0: #{tpu_custom_call.1}
  #allocation0 [shape = 'u32[]', space=smem, size = 0x4, offset = 0x4, fixed_abs, tag = 'smem constant byte address 0x4 - core index']
  #allocation1 [shape = 'u32[72,128]{1,0:T(1,128)}', space=vmem, size = 0x9000, scoped, tag = 'internal scratch']
  %s0 = inlined_call_operand.vmem [shape: f32[4,13], index: 0, kind: input, shape index: {}]
  %s1 = inlined_call_operand.vmem [shape: f32[13,64], index: 1, kind: input, shape index: {}]
  %s2 = inlined_call_operand.vmem [shape: f32[1,64], index: 2, kind: input, shape index: {}]
  %s3 = inlined_call_operand.vmem [shape: f32[32,16], index: 3, kind: input, shape index: {}]
  %s4 = inlined_call_operand.vmem [shape: f32[1,16], index: 4, kind: input, shape index: {}]
  %s5 = inlined_call_operand.vmem [shape: f32[8,32], index: 5, kind: input, shape index: {}]
  %s6 = inlined_call_operand.vmem [shape: f32[1,32], index: 6, kind: input, shape index: {}]
  %s7 = inlined_call_operand.vmem [shape: f32[2,8], index: 7, kind: input, shape index: {}]
  %s8 = inlined_call_operand.vmem [shape: f32[3,16], index: 8, kind: input, shape index: {}]
  %s9 = inlined_call_operand.vmem [shape: f32[2], index: 9, kind: input, shape index: {}]
  %s10 = inlined_call_operand.hbm [shape: f32[4,128], index: 10, kind: output, shape index: {}]
  %s11 = sld [smem:[#allocation0]]
  $region54: #{tpu_custom_call.1} parent=0
    _
  %s13 = ssub.s32 1, %s11
  %s14 = scalar_select 0, %s13, %s11
  $region1: #{tpu_custom_call.1} parent=0
    #allocation2 [shape = 'u8[512]{0}', space=smem, size = 0x200, scoped, tag = 'input window, operand 9, single buffered']
    #allocation3 [shape = 's32[1]{0}', space=sflag, size = 0x4, scoped, tag = 'scoped memory for tpu_custom_call.1']
    #allocation4 [shape = 's32[1]{0}', space=sflag, size = 0x4, scoped, tag = 'scoped memory for tpu_custom_call.1']
    #allocation5 [shape = 'u8[2048]{0}', space=vmem, size = 0x800, scoped, tag = 'output window, operand 0, single buffered']
    %15 = vsyncpa [#allocation4], 0
    %16 = vsyncpa [#allocation3], 0
    // Predicated region
    $region2: #{tpu_custom_call.1} parent=1 // pred_check
      _
    $region3: #{tpu_custom_call.1} parent=1 // pred_check_branch
      %18 = sbr.rel (0) target = $region5
    $region4: #{tpu_custom_call.1} parent=1 // pred_region
      _
    $region5: #{tpu_custom_call.1} parent=1 // pred_fallthru
      _
    // Predicated region
    $region6: #{tpu_custom_call.1} parent=1 // pred_check
      _
    $region7: #{tpu_custom_call.1} parent=1 // pred_check_branch
      %20 = sbr.rel (0) target = $region9
    $region8: #{tpu_custom_call.1} parent=1 // pred_region
      _
    $region9: #{tpu_custom_call.1} parent=1 // pred_fallthru
      _
    // Predicated region
    $region10: #{tpu_custom_call.1} parent=1 // pred_check
      _
    $region11: #{tpu_custom_call.1} parent=1 // pred_check_branch
      %22 = sbr.rel (0) target = $region13
    $region12: #{tpu_custom_call.1} parent=1 // pred_region
      _
    $region13: #{tpu_custom_call.1} parent=1 // pred_fallthru
      _
    // Predicated region
    $region14: #{tpu_custom_call.1} parent=1 // pred_check
      _
    $region15: #{tpu_custom_call.1} parent=1 // pred_check_branch
      %24 = sbr.rel (0) target = $region17
    $region16: #{tpu_custom_call.1} parent=1 // pred_region
      _
    $region17: #{tpu_custom_call.1} parent=1 // pred_fallthru
      _
    // Predicated region
    $region18: #{tpu_custom_call.1} parent=1 // pred_check
      _
    $region19: #{tpu_custom_call.1} parent=1 // pred_check_branch
      %26 = sbr.rel (0) target = $region21
    $region20: #{tpu_custom_call.1} parent=1 // pred_region
      _
    $region21: #{tpu_custom_call.1} parent=1 // pred_fallthru
      _
    // Predicated region
    $region22: #{tpu_custom_call.1} parent=1 // pred_check
      _
    $region23: #{tpu_custom_call.1} parent=1 // pred_check_branch
      %28 = sbr.rel (0) target = $region25
    $region24: #{tpu_custom_call.1} parent=1 // pred_region
      _
    $region25: #{tpu_custom_call.1} parent=1 // pred_fallthru
      _
    // Predicated region
    $region26: #{tpu_custom_call.1} parent=1 // pred_check
      _
    $region27: #{tpu_custom_call.1} parent=1 // pred_check_branch
      %30 = sbr.rel (0) target = $region29
    $region28: #{tpu_custom_call.1} parent=1 // pred_region
      _
    $region29: #{tpu_custom_call.1} parent=1 // pred_fallthru
      _
    // Predicated region
    $region30: #{tpu_custom_call.1} parent=1 // pred_check
      _
    $region31: #{tpu_custom_call.1} parent=1 // pred_check_branch
      %32 = sbr.rel (0) target = $region33
    $region32: #{tpu_custom_call.1} parent=1 // pred_region
      _
    $region33: #{tpu_custom_call.1} parent=1 // pred_fallthru
      _
    // Predicated region
    $region34: #{tpu_custom_call.1} parent=1 // pred_check
      _
    $region35: #{tpu_custom_call.1} parent=1 // pred_check_branch
      %34 = sbr.rel (0) target = $region37
    $region36: #{tpu_custom_call.1} parent=1 // pred_region
      _
    $region37: #{tpu_custom_call.1} parent=1 // pred_fallthru
      _
    // Predicated region
    $region38: #{tpu_custom_call.1} parent=1 // pred_check
      _
    $region39: #{tpu_custom_call.1} parent=1 // pred_check_branch
      %36 = sbr.rel (0) target = $region41
    $region40: #{tpu_custom_call.1} parent=1 // pred_region
      %38 = vsyncadd [#allocation4], 0
      %s40 = sshll.u32 %s9, 4
      %s41 = int_to_ptr.vmem [resolvable:$true] %s40
      %43 = dma.vmem_to_smem %s41, 16, [#allocation2], [#allocation4]
    $region41: #{tpu_custom_call.1} parent=1 // pred_fallthru
      _
    // Predicated region
    $region42: #{tpu_custom_call.1} parent=1 // pred_check
      _
    $region43: #{tpu_custom_call.1} parent=1 // pred_check_branch
      %45 = sbr.rel (0) target = $region45
    $region44: #{tpu_custom_call.1} parent=1 // pred_region
      %47 = dma.done [#allocation4], 16
    $region45: #{tpu_custom_call.1} parent=1 // pred_fallthru
      _
    %48 = sfence
    %v49 = vld [vmem:[%s0] sm:$0xf]
    %v50 = vld [vmem:[%s1] sm:$0xff]
    %v51 = vld [vmem:[%s1 + $0x8] sm:$0x1f]
    %v52 = vld [vmem:[%s2] sm:$0x1]
    %v54 = vperm.slane %v52, 0
    %vm56 = vcmask 105472
    %v58 = vsel %vm56, %v49, 0
    %vm60 = vcmask 1044480
    %v62 = vsel %vm60, %v51, 0
    %64 = vmatpush.msra.mxu0 0.0
    %65 = vmatpush.msra.mxu0 0.0
    %66 = vmatpush.msra.mxu0 0.0
    %67 = vmatpush.msra.mxu0 0.0
    %68 = vmatpush.msra.mxu0 0.0
    %69 = vmatpush.msra.mxu0 0.0
    %70 = vmatpush.msra.mxu0 0.0
    %71 = vmatpush.msra.mxu0 0.0
    %72 = vmatpush.msra.mxu0 0.0
    %73 = vmatpush.msra.mxu0 0.0
    %74 = vmatpush.msra.mxu0 0.0
    %75 = vmatpush.msra.mxu0 0.0
    %76 = vmatpush.msra.mxu0 0.0
    %77 = vmatpush.msra.mxu0 0.0
    %78 = vmatpush.msra.mxu0 %v62
    %79 = vmatpush.msra.mxu0 %v50
    %80 = vmatmul.f32.gmra.mxu0 %v58
    %v81 = vpop.f32.mrf.mxu0
    %v82 = vadd.f32 %v54, %v81
    %83 = vdwg.mxu0
    %85 = vrot.lane.b32.xlu0 %v82, 96
    %v86 = vpop.permute.xlu0 %85
    %v88 = vmax.f32 %v82, %v86
    %v89 = vld [vmem:[%s3] sm:$0xff]
    %v90 = vld [vmem:[%s3 + $0x8] sm:$0xff]
    %v91 = vld [vmem:[%s3 + $0x10] sm:$0xff]
    %v92 = vld [vmem:[%s3 + $0x18] sm:$0xff]
    %v93 = vld [vmem:[%s4] sm:$0x1]
    %v95 = vperm.slane %v93, 0
    %vm97 = vcmask 261120
    %v99 = vsel %vm97, %v88, 0
    %101 = vmatpush.msra.mxu0 0.0
    %102 = vmatpush.msra.mxu0 0.0
    %103 = vmatpush.msra.mxu0 0.0
    %104 = vmatpush.msra.mxu0 0.0
    %105 = vmatpush.msra.mxu0 0.0
    %106 = vmatpush.msra.mxu0 0.0
    %107 = vmatpush.msra.mxu0 0.0
    %108 = vmatpush.msra.mxu0 0.0
    %109 = vmatpush.msra.mxu0 0.0
    %110 = vmatpush.msra.mxu0 0.0
    %111 = vmatpush.msra.mxu0 0.0
    %112 = vmatpush.msra.mxu0 0.0
    %113 = vmatpush.msra.mxu0 %v92
    %114 = vmatpush.msra.mxu0 %v91
    %115 = vmatpush.msra.mxu0 %v90
    %116 = vmatpush.msra.mxu0 %v89
    %117 = vmatmul.f32.gmra.mxu0 %v99
    %v118 = vpop.f32.mrf.mxu0
    %v119 = vadd.f32 %v95, %v118
    %120 = vdwg.mxu0
    %v121 = vld [vmem:[%s7] sm:$0x1]
    %v122 = vperm.slane %v121, 0
    %123 = vset.pattern.permute.xlu0 12
    %124 = vperm.xlu0 %123, %v49
    %v125 = vpop.permute.xlu0 %124
    %v127 = vmul.f32 %v122, %v125
    %v128 = vld [vmem:[%s7 + $0x1] sm:$0x1]
    %v129 = vperm.slane %v128, 0
    %v130 = vadd.f32 %v127, %v129
    %v131 = vand.u32 2147483647, %v130
    %vm132 = vcmp.le.f32.partialorder %v131, 0.7853982
    %vm133 = vcmp.lt.s32.totalorder %v130, 0
    %v134 = vand.u32 %v130, 2139095040
    %v135 = vshrl.u32 %v134, 23
    %v136 = vsub.s32 %v135, 127
    %v137 = vand.u32 2147483647, %v130
    %v138 = vand.u32 %v137, 8388607
    %v139 = vor.u32 %v138, 8388608
    %v140 = vsub.s32 0, %v139
    %v141 = vadd.s32 %v136, 1
    %vm142 = vcmp.gt.s32.totalorder %v141, 0
    %v143 = vsel %vm142, %v141, 0
    %v144 = vshrl.u32 %v143, 5
    %v145 = vand.u32 %v143, 31
    %v146 = vsub.s32 32, %v145
    %v147 = vshrl.u32 683565275, %v146
    %v148 = vshll.u32 683565275, %v145
    %v149 = vshrl.u32 2475754826, %v146
    %v150 = vor.u32 %v148, %v149
    %v151 = vshll.u32 2475754826, %v145
    %v152 = vshrl.u32 2131351028, %v146
    %v153 = vor.u32 %v151, %v152
    %v154 = vshll.u32 2131351028, %v145
    %v155 = vshrl.u32 2102212464, %v146
    %v156 = vor.u32 %v154, %v155
    %v157 = vshll.u32 2102212464, %v145
    %v158 = vshrl.u32 920167782, %v146
    %v159 = vor.u32 %v157, %v158
    %v160 = vshll.u32 920167782, %v145
    %v161 = vshrl.u32 1326507024, %v146
    %v162 = vor.u32 %v160, %v161
    %vm163 = vcmp.lt.s32.totalorder %v144, 1
    %vm164 = vcmp.lt.s32.totalorder %v144, 2
    %vm165 = vcmp.lt.s32.totalorder %v144, 3
    %vm166 = vcmp.lt.s32.totalorder %v144, 4
    %v167 = vsel %vm163, %v147, %v150
    %v168 = vsel %vm166, %v156, 2102212464
    %v169 = vsel %vm165, %v153, %v168
    %v170 = vsel %vm164, %v167, %v169
    %v171 = vsel %vm163, %v150, %v153
    %v172 = vsel %vm166, %v159, 920167782
    %v173 = vsel %vm165, %v156, %v172
    %v174 = vsel %vm164, %v171, %v173
    %v175 = vsel %vm163, %v153, %v156
    %v176 = vsel %vm166, %v162, 1326507024
    %v177 = vsel %vm165, %v159, %v176
    %v178 = vsel %vm164, %v175, %v177
    %v179 = vshll.u32 %v139, 8
    %v180 = vand.u32 %v179, 65535
    %v181 = vshrl.u32 %v179, 16
    %v182 = vand.u32 %v178, 65535
    %v183 = vshrl.u32 %v178, 16
    %v184 = vmul.u32 %v180, %v182
    %v185 = vmul.u32 %v180, %v183
    %v186 = vmul.u32 %v181, %v182
    %v187 = vmul.u32 %v181, %v183
    %v188 = vshll.u32 %v185, 16
    %v189 = vshrl.u32 %v185, 16
    %v190 = vshll.u32 %v186, 16
    %v191 = vshrl.u32 %v186, 16
    %vm192 = vc.u32 %v184, %v188
    %v193 = vsel %vm192, 1, 0
    %v194 = vadd.s32 %v184, %v188
    %v195 = vadd.s32 %v187, %v193
    %vm196 = vc.u32 %v194, %v190
    %v197 = vsel %vm196, 1, 0
    %v198 = vadd.s32 %v194, %v190
    %v199 = vadd.s32 %v195, %v197
    %v200 = vadd.s32 %v199, %v189
    %v201 = vadd.s32 %v200, %v191
    %v202 = vand.u32 %v179, 65535
    %v203 = vshrl.u32 %v179, 16
    %v204 = vand.u32 %v174, 65535
    %v205 = vshrl.u32 %v174, 16
    %v206 = vmul.u32 %v202, %v204
    %v207 = vmul.u32 %v202, %v205
    %v208 = vmul.u32 %v203, %v204
    %v209 = vmul.u32 %v203, %v205
    %v210 = vshll.u32 %v207, 16
    %v211 = vshrl.u32 %v207, 16
    %v212 = vshll.u32 %v208, 16
    %v213 = vshrl.u32 %v208, 16
    %vm214 = vc.u32 %v206, %v210
    %v215 = vsel %vm214, 1, 0
    %v216 = vadd.s32 %v206, %v210
    %v217 = vadd.s32 %v209, %v215
    %vm218 = vc.u32 %v216, %v212
    %v219 = vsel %vm218, 1, 0
    %v220 = vadd.s32 %v216, %v212
    %v221 = vadd.s32 %v217, %v219
    %v222 = vadd.s32 %v221, %v211
    %v223 = vadd.s32 %v222, %v213
    %v224 = vmul.u32 %v179, %v170
    %v225 = vadd.s32 %v201, %v220
    %vm226 = vc.u32 %v201, %v220
    %v227 = vadd.s32 %v223, 1
    %v228 = vsel %vm226, %v227, %v223
    %v229 = vadd.s32 %v224, %v228
    %v230 = vadd.s32 %v229, 536870912
    %v231 = vshrl.u32 %v230, 30
    %v232 = vshll.u32 %v231, 30
    %v233 = vsub.s32 %v229, %v232
    %vm234 = vcmp.lt.s32.totalorder %v233, 0
    %v235 = vsub.s32 0, %v233
    %v236 = vsel %vm234, %v235, %v233
    %v237 = vclz %v236
    %v238 = vsub.s32 %v237, 2
    %vm239 = vcmp.gt.s32.totalorder 0, %v238
    %v240 = vsel %vm239, 0, %v238
    %v241 = vsub.s32 32, %v240
    %v242 = vshll.u32 %v233, %v240
    %v243 = vshrl.u32 %v225, %v241
    %v244 = vor.u32 %v242, %v243
    %v245 = vsub.s32 4294967266, %v240
    %v246 = vadd.s32 %v245, 127
    %v247 = vshll.u32 %v246, 23
    %v248 = vor.u32 4788187, %v247
    %v249 = vand.u32 2147483647, %v248
    %v251 = vcvt.s32.f32 %v244
    %v252 = vmul.f32 %v251, %v249
    %v253 = vxor.u32 %v252, 2147483648
    %v254 = vsel %vm133, %v253, %v252
    %v255 = vsub.s32 4, %v231
    %v256 = vsel %vm133, %v255, %v231
    %v257 = vsel %vm132, %v130, %v254
    %v258 = vsel %vm132, 0, %v256
    %v259 = vmul.f32 %v257, %v257
    %v260 = vmul.f32 %v259, -0.001358992
    %v261 = vadd.f32 %v260, 0.041655596
    %v262 = vmul.f32 %v259, %v261
    %v263 = vadd.f32 %v262, -0.4999988
    %v264 = vmul.f32 %v259, %v263
    %v265 = vadd.f32 1.0, %v264
    %v266 = vmul.f32 %v257, %v257
    %v267 = vmul.f32 %v266, -0.00019511016
    %v268 = vadd.f32 %v267, 0.008332121
    %v269 = vmul.f32 %v266, %v268
    %v270 = vadd.f32 %v269, -0.16666654
    %v271 = vmul.f32 %v266, %v270
    %v272 = vadd.f32 %v271, 1.0
    %v273 = vmul.f32 %v272, %v257
    %vm274 = vweird.f32 %v130
    %v275 = vadd.s32 %v258, 3
    %v276 = vand.u32 %v275, 3
    %vm277 = vcmp.lt.s32.totalorder %v276, 2
    %vm278 = vcmp.eq.s32.totalorder %v276, 0
    %v279 = vxor.u32 %v273, 2147483648
    %v280 = vsel %vm278, %v265, %v279
    %vm281 = vcmp.eq.s32.totalorder %v276, 2
    %v282 = vxor.u32 %v265, 2147483648
    %v283 = vsel %vm281, %v282, %v273
    %v284 = vsel %vm277, %v280, %v283
    %v285 = vsel %vm274, nan, %v284
    %v286 = vld [vmem:[%s5] sm:$0xff]
    %v287 = vld [vmem:[%s6] sm:$0x1]
    %v289 = vperm.slane %v287, 0
    %vm291 = vcmask 64512
    %v293 = vsel %vm291, %v285, 0
    %295 = vmatpush.msra.mxu0 0.0
    %296 = vmatpush.msra.mxu0 0.0
    %297 = vmatpush.msra.mxu0 0.0
    %298 = vmatpush.msra.mxu0 0.0
    %299 = vmatpush.msra.mxu0 0.0
    %300 = vmatpush.msra.mxu0 0.0
    %301 = vmatpush.msra.mxu0 0.0
    %302 = vmatpush.msra.mxu0 0.0
    %303 = vmatpush.msra.mxu0 0.0
    %304 = vmatpush.msra.mxu0 0.0
    %305 = vmatpush.msra.mxu0 0.0
    %306 = vmatpush.msra.mxu0 0.0
    %307 = vmatpush.msra.mxu0 0.0
    %308 = vmatpush.msra.mxu0 0.0
    %309 = vmatpush.msra.mxu0 0.0
    %310 = vmatpush.msra.mxu0 %v286
    %311 = vmatmul.f32.gmra.mxu0 %v293
    %v312 = vpop.f32.mrf.mxu0
    %v313 = vadd.f32 %v289, %v312
    %314 = vdwg.mxu0
    %v315 = vmul.f32 %v313, 1.442695
    %v316 = vpow.pop %v315
    %v317 = vld [vmem:[%s8] sm:$0x1]
    %v318 = vld [vmem:[%s8 + $0x1] sm:$0x1]
    %v319 = vld [vmem:[%s8 + $0x2] sm:$0x1]
    %s320 = sld [smem:[#allocation2]]
    %s321 = sld [smem:[#allocation2 + $0x1]]
    %v322 = vmul.f32 %v119, %v119
    %v323 = vperm.slane %v317, 0
    %v324 = vmul.f32 %v316, %v323
    %v325 = vperm.slane %v319, 0
    %v326 = vsub.f32 %v325, %v324
    %v327 = vmul.f32 %v322, %v326
    %v328 = vmul.f32 %v119, %v316
    %330 = vrot.lane.b32.xlu0 %v313, 112
    %v331 = vpop.permute.xlu0 %330
    %v333 = vmul.f32 %v328, %v331
    %v334 = vperm.slane %v318, 0
    %v335 = vmul.f32 %v333, %v334
    %v336 = vsub.f32 %v327, %v335
    %v337 = vstv %s320
    %v338 = vmul.f32 %v313, %v337
    %v339 = vadd.f32 %v336, %v338
    %vm340 = vcmask 125952
    %v341 = vsel %vm340, %v339, 0.0
    %342 = vadd.xlane.f32.xlu0 %v341
    %v343 = vpop.xlane.xlu0 %342
    %v344 = vstv %s321
    %v345 = vadd.f32 %v343, %v344
    %vm346 = vcmask 3072
    %347 = vst.msk [vmem:[#allocation5] sm:$0xf] %vm346, %v345
    %349 = vrot.lane.b32.xlu0 %v119, 1
    %v350 = vpop.permute.xlu0 %349
    %vm352 = vcmask 134152
    %353 = vst.msk [vmem:[#allocation5] sm:$0xf] %vm352, %v350
    %355 = vrot.lane.b32.xlu0 %v316, 17
    %v356 = vpop.permute.xlu0 %355
    %vm358 = vcmask 265352
    %359 = vst.msk [vmem:[#allocation5] sm:$0xf] %vm358, %v356
    %360 = vrot.lane.b32.xlu0 %v313, 17
    %v361 = vpop.permute.xlu0 %360
    %vm363 = vcmask 396552
    %364 = vst.msk [vmem:[#allocation5] sm:$0xf] %vm363, %v361
    %vm365 = vcmask 1043848
    %366 = vst.msk [vmem:[#allocation5] sm:$0xf] %vm365, 0.0
    // Predicated region
    $region46: #{tpu_custom_call.1} parent=1 // pred_check
      _
    $region47: #{tpu_custom_call.1} parent=1 // pred_check_branch
      %368 = sbr.rel (0) target = $region49
    $region48: #{tpu_custom_call.1} parent=1 // pred_region
      %370 = vsyncadd [#allocation3], 0
      %s372 = sshll.u32 [#allocation5], 4
      %s373 = int_to_ptr.vmem [resolvable:$true] %s372
      %s374 = sshll.u32 %s10, 4
      %s375 = int_to_ptr.hbm [resolvable:$true] %s374
      %377 = dma.vmem_to_hbm [thread:$0]  %s373, 64, %s375, [#allocation3]
    $region49: #{tpu_custom_call.1} parent=1 // pred_fallthru
      _
    // Predicated region
    $region50: #{tpu_custom_call.1} parent=1 // pred_check
      _
    $region51: #{tpu_custom_call.1} parent=1 // pred_check_branch
      %379 = sbr.rel (0) target = $region53
    $region52: #{tpu_custom_call.1} parent=1 // pred_region
      %381 = dma.done [#allocation3], 64
    $region53: #{tpu_custom_call.1} parent=1 // pred_fallthru
      _
    %382 = vsyncpa [#allocation3], 1
    %383 = vsyncpa [#allocation4], 1

</llo_original>
